<compile_context>
chip_gen: v5e
topology: v5e:2x2
jax: 0.10.0
libtpu: 0.0.40
codegen_flags: <defaults>
</compile_context>

<pallas_src>
import jax
import jax.numpy as jnp
from jax import lax
from jax.experimental import pallas as pl
from jax.experimental.pallas import tpu as pltpu

_LANES = 128


def _round_up(x, m):
    return ((x + m - 1) // m) * m


def _tpu_vmem_capacity_bytes():
    """Best-effort VMEM capacity query; None if unavailable."""
    try:
        info = pltpu.get_tpu_info()
        for attr in ("vmem_capacity_bytes", "vmem_bytes"):
            v = getattr(info, attr, None)
            if v:
                return int(v)
    except Exception:
        pass
    return None


def _num_tensorcores():
    """Best-effort TensorCore-per-chip count (2 on v7x/megacore, 1 on v5e/v6e)."""
    try:
        info = pltpu.get_tpu_info()
        for attr in ("num_cores", "core_count", "num_tensorcores",
                     "tensorcores_per_chip"):
            v = getattr(info, attr, None)
            if isinstance(v, int) and v > 0:
                return min(int(v), 2)
    except Exception:
        pass
    try:
        dev = jax.devices()[0]
        for attr in ("num_cores", "core_count"):
            v = getattr(dev, attr, None)
            if isinstance(v, int) and v > 0:
                return min(int(v), 2)
    except Exception:
        pass
    return 1


def _make_mse_kernel(rows, cols, r, g_iters, steps, bm, ragged):
    """Partial sum-of-squared-differences kernel.

    Grid = (n_chunks [parallel], steps [arbitrary]).  The output block (one
    (r, cols) f32 slab per chunk) is VMEM-resident across the step axis and
    acts as the accumulator (P3).  Per step, a fori_loop walks ~32 KiB
    sub-slices kept in vregs, giving multiple independent accumulation chains
    (ILP) and never materializing a block-sized intermediate in VMEM.
    """

    def kernel(pred_ref, tgt_ref, out_ref):
        c = pl.program_id(0)
        s = pl.program_id(1)

        @pl.when(s == 0)
        def _init():
            out_ref[...] = jnp.zeros_like(out_ref)

        # Logical first row of this block (index_map may clamp the physical
        # block for dead tail steps; masking below always uses logical rows).
        row0 = (c * steps + s) * bm

        if ragged:
            base_ids = lax.broadcasted_iota(jnp.int32, (r, cols), 0)

        def slab_sq_diff(gi, off):
            x = pred_ref[pl.ds(off, r), :].astype(jnp.float32)
            y = tgt_ref[pl.ds(off, r), :].astype(jnp.float32)
            d = x - y
            dd = d * d
            if ragged:
                # Rows at/after `rows` are Pallas block padding (garbage) or
                # belong to a dead (clamped) block -> zero them out.
                limit = rows - row0 - gi * r
                dd = jnp.where(base_ids < limit, dd, 0.0)
            return dd

        if g_iters == 1:
            acc = slab_sq_diff(0, 0)
        else:
            unroll = 4 if (g_iters % 4 == 0) else 1
            acc = lax.fori_loop(
                0, g_iters,
                lambda gi, a: a + slab_sq_diff(gi, pl.multiple_of(gi * r, r)),
                jnp.zeros((r, cols), jnp.float32),
                unroll=unroll,
            )
        out_ref[...] += acc

    return kernel


def rms_mse_loss(pred, target, *, block_bytes=None, num_chunks=None):
    """Pallas equivalent of RMSLoss({'type': 'MSE'}, rms_discretize=False):
    mean((pred - target)**2) over all elements.  No padding / extra HBM copies
    for any input size."""
    assert pred.shape == target.shape, "MSELoss requires matching shapes"
    assert pred.dtype == target.dtype

    n = int(pred.size)
    if n == 0:  # torch MSELoss on empty input -> nan
        return jnp.float32(jnp.nan)

    itemsize = pred.dtype.itemsize
    sub = max(8, 32 // itemsize)  # sublane depth: 8 f32 / 16 bf16 / 32 int8

    # ---- zero-copy 2-D slab view of the flattened operands (no jnp.pad) ----
    if n % _LANES == 0:
        rows, cols = n // _LANES, _LANES          # fully lane/sublane dense
    else:
        cols = int(pred.shape[-1]) if pred.ndim >= 1 else 1
        rows = n // cols                          # exact: rows*cols == n
    x2 = pred.reshape(rows, cols)
    y2 = target.reshape(rows, cols)

    # Rows per inner fori_loop iteration: ~8 f32 vregs per operand slice,
    # i.e. 8+ independent accumulator vregs (breaks the serial add chain).
    lane_tiles = pl.cdiv(cols, _LANES)
    r = max(sub, ((64 // lane_tiles) // sub) * sub)

    if rows <= r:
        r = rows
        bm = rows
        g_iters = 1
    else:
        if block_bytes is None:
            vmem_cap = _tpu_vmem_capacity_bytes()
            # ~4 MiB/input block everywhere (v7x safe); 8 MiB on 128-MiB-VMEM
            # parts (v5e/v6e) where there is headroom.
            block_bytes = (8 << 20) if (vmem_cap is not None
                                        and vmem_cap >= (100 << 20)) else (4 << 20)
        bytes_per_row = _round_up(cols, _LANES) * itemsize
        bm = max(r, (block_bytes // bytes_per_row) // r * r)
        bm = min(bm, _round_up(rows, r))
        g_iters = bm // r

    row_blocks = pl.cdiv(rows, bm)
    if num_chunks is None:
        num_chunks = _num_tensorcores()
    n_chunks = max(1, min(int(num_chunks), row_blocks))
    steps = pl.cdiv(row_blocks, n_chunks)
    has_dead = steps * n_chunks != row_blocks     # trailing dead grid steps
    ragged = has_dead or (rows % bm != 0)         # any masking needed at all?

    def in_map(c, s):
        b = c * steps + s
        if has_dead:
            b = jnp.minimum(b, row_blocks - 1)    # clamp dead steps (masked)
        return (b, 0)

    kernel = _make_mse_kernel(rows, cols, r, g_iters, steps, bm, ragged)

    block_vmem = bm * _round_up(cols, _LANES) * itemsize
    vmem_limit = int(min(96 << 20, max(40 << 20, 5 * block_vmem + (8 << 20))))

    cost = pl.CostEstimate(
        flops=3 * n,
        transcendentals=0,
        bytes_accessed=2 * n * itemsize + n_chunks * r * cols * 4,
    )

    partials = pl.pallas_call(
        kernel,
        out_shape=jax.ShapeDtypeStruct((n_chunks, r, cols), jnp.float32),
        grid_spec=pltpu.PrefetchScalarGridSpec(
            num_scalar_prefetch=0,
            grid=(n_chunks, steps),
            in_specs=[
                pl.BlockSpec((bm, cols), in_map),
                pl.BlockSpec((bm, cols), in_map),
            ],
            out_specs=pl.BlockSpec((None, r, cols), lambda c, s: (c, 0, 0)),
        ),
        compiler_params=pltpu.CompilerParams(
            # chunk axis parallel (both TCs on v7x/megacore), reduction axis
            # arbitrary so the output block stays resident as an accumulator.
            dimension_semantics=("parallel", "arbitrary"),
            vmem_limit_bytes=vmem_limit,
        ),
        cost_estimate=cost,
    )(x2, y2)

    # Tiny final cross-lane reduction + mean normalization (two-level sum also
    # keeps f32 rounding error small for very large inputs).
    return jnp.sum(partials) / n


if __name__ == "__main__":
    key = jax.random.PRNGKey(0)

    def _check(shape, **kw):
        k1, k2 = jax.random.split(jax.random.fold_in(key, hash(shape) % 1000))
        p = jax.random.normal(k1, shape, dtype=jnp.float32)
        t = jax.random.normal(k2, shape, dtype=jnp.float32)
        got = jax.block_until_ready(rms_mse_loss(p, t, **kw))
        ref = jnp.mean((p - t) ** 2)
        assert jnp.allclose(got, ref, rtol=1e-5, atol=1e-6), (shape, got, ref)

    # Main small example consistent with the module (batch=2, 256 RMS frames).
    _check((2, 256))
    # Lane-aligned but block-ragged (exercises in-kernel masking + fori_loop).
    _check((70, 128))
    # Non-lane-aligned element count (exercises the zero-copy fallback view).
    _check((3, 100))
    # Multi-block, multi-chunk with a dead tail step (clamped + masked).
    _check((300, 128), block_bytes=32768, num_chunks=2)

    print("KERNEL_OK")
</pallas_src>

<mosaic_0001>
module attributes {stable_mosaic.version = 11 : i64} {
  func.func @kernel(%arg0: i32, %arg1: i32, %arg2: memref<4x128xf32, #tpu.memory_space<vmem>>, %arg3: memref<4x128xf32, #tpu.memory_space<vmem>>, %arg4: memref<1x4x128xf32, #tpu.memory_space<vmem>>) attributes {dimension_semantics = [#tpu.dimension_semantics<parallel>, #tpu.dimension_semantics<arbitrary>], iteration_bounds = array<i64: 1, 1>, scalar_prefetch = 0 : i64, scratch_operands = 0 : i64, tpu.core_type = #tpu.core_type<tc>, window_params = [{transform_indices = @transform_0, window_bounds = array<i64: 4, 128>}, {transform_indices = @transform_1, window_bounds = array<i64: 4, 128>}, {transform_indices = @transform_2, window_bounds = array<i64: 1, 4, 128>}]} {
    %c0_i32 = arith.constant 0 : i32
    %0 = arith.cmpi eq, %arg1, %c0_i32 : i32
    %1 = arith.extui %0 : i1 to i32
    %c0_i32_0 = arith.constant 0 : i32
    %2 = arith.cmpi ne, %1, %c0_i32_0 : i32
    scf.if %2 {
      %cst = arith.constant 0.000000e+00 : f32
      %13 = vector.broadcast %cst : f32 to vector<4x128xf32>
      %c0_10 = arith.constant 0 : index
      %c0_11 = arith.constant 0 : index
      %c0_12 = arith.constant 0 : index
      %14 = vector.load %arg4[%c0_10, %c0_11, %c0_12] : memref<1x4x128xf32, #tpu.memory_space<vmem>>, vector<1x4x128xf32>
      %15 = vector.shape_cast %14 : vector<1x4x128xf32> to vector<4x128xf32>
      %16 = vector.shape_cast %13 : vector<4x128xf32> to vector<1x4x128xf32>
      tpu.vector_store %arg4[%c0_10, %c0_11, %c0_12], %16 {strides = array<i32>} : memref<1x4x128xf32, #tpu.memory_space<vmem>>, vector<1x4x128xf32>,
    } else {
    }
    %c0 = arith.constant 0 : index
    %c0_1 = arith.constant 0 : index
    %3 = vector.load %arg2[%c0, %c0_1] : memref<4x128xf32, #tpu.memory_space<vmem>>, vector<4x128xf32>
    %c0_2 = arith.constant 0 : index
    %c0_3 = arith.constant 0 : index
    %4 = vector.load %arg3[%c0_2, %c0_3] : memref<4x128xf32, #tpu.memory_space<vmem>>, vector<4x128xf32>
    %5 = arith.subf %3, %4 : vector<4x128xf32>
    %6 = arith.mulf %5, %5 : vector<4x128xf32>
    %c0_4 = arith.constant 0 : index
    %c0_5 = arith.constant 0 : index
    %c0_6 = arith.constant 0 : index
    %7 = vector.load %arg4[%c0_4, %c0_5, %c0_6] : memref<1x4x128xf32, #tpu.memory_space<vmem>>, vector<1x4x128xf32>
    %8 = vector.shape_cast %7 : vector<1x4x128xf32> to vector<4x128xf32>
    %9 = arith.addf %8, %6 : vector<4x128xf32>
    %c0_7 = arith.constant 0 : index
    %c0_8 = arith.constant 0 : index
    %c0_9 = arith.constant 0 : index
    %10 = vector.load %arg4[%c0_7, %c0_8, %c0_9] : memref<1x4x128xf32, #tpu.memory_space<vmem>>, vector<1x4x128xf32>
    %11 = vector.shape_cast %10 : vector<1x4x128xf32> to vector<4x128xf32>
    %12 = vector.shape_cast %9 : vector<4x128xf32> to vector<1x4x128xf32>
    tpu.vector_store %arg4[%c0_7, %c0_8, %c0_9], %12 {strides = array<i32>} : memref<1x4x128xf32, #tpu.memory_space<vmem>>, vector<1x4x128xf32>,
    return
  }
  func.func @transform_0(%arg0: i32, %arg1: i32) -> (i32, i32) {
    %c1_i32 = arith.constant 1 : i32
    %0 = arith.muli %arg0, %c1_i32 : i32
    %1 = arith.addi %0, %arg1 : i32
    %c0_i32 = arith.constant 0 : i32
    %c0_i32_0 = arith.constant 0 : i32
    return %1, %c0_i32 : i32, i32
  }
  func.func @transform_1(%arg0: i32, %arg1: i32) -> (i32, i32) {
    %c1_i32 = arith.constant 1 : i32
    %0 = arith.muli %arg0, %c1_i32 : i32
    %1 = arith.addi %0, %arg1 : i32
    %c0_i32 = arith.constant 0 : i32
    %c0_i32_0 = arith.constant 0 : i32
    return %1, %c0_i32 : i32, i32
  }
  func.func @transform_2(%arg0: i32, %arg1: i32) -> (i32, i32, i32) {
    %c0_i32 = arith.constant 0 : i32
    %c0_i32_0 = arith.constant 0 : i32
    %c0_i32_1 = arith.constant 0 : i32
    return %arg0, %c0_i32, %c0_i32_0 : i32, i32, i32
  }
}

</mosaic_0001>

<llo_original>
// kernel: tpu_custom_call.1
$region0: #{tpu_custom_call.1}
  #allocation0 [shape = 'u32[]', space=smem, size = 0x4, offset = 0x4, fixed_abs, tag = 'smem constant byte address 0x4 - core index']
  #allocation1 [shape = 'u32[72,128]{1,0:T(1,128)}', space=vmem, size = 0x9000, scoped, tag = 'internal scratch']
  %s0 = inlined_call_operand.hbm [shape: f32[4,128], index: 0, kind: input, shape index: {}]
  %s1 = inlined_call_operand.hbm [shape: f32[4,128], index: 1, kind: input, shape index: {}]
  %s2 = inlined_call_operand.hbm [shape: f32[1,4,128], index: 2, kind: output, shape index: {}]
  %s3 = sld [smem:[#allocation0]]
  $region30: #{tpu_custom_call.1} parent=0
    _
  %s5 = ssub.s32 1, %s3
  %s6 = scalar_select 0, %s5, %s3
  $region1: #{tpu_custom_call.1} parent=0
    #allocation2 [shape = 'u8[2048]{0}', space=vmem, size = 0x800, scoped, tag = 'input window, operand 0, single buffered']
    #allocation3 [shape = 's32[1]{0}', space=sflag, size = 0x4, scoped, tag = 'scoped memory for tpu_custom_call.1']
    #allocation4 [shape = 's32[1]{0}', space=sflag, size = 0x4, scoped, tag = 'scoped memory for tpu_custom_call.1']
    #allocation5 [shape = 'u8[2048]{0}', space=vmem, size = 0x800, scoped, tag = 'input window, operand 1, single buffered']
    #allocation6 [shape = 's32[1]{0}', space=sflag, size = 0x4, scoped, tag = 'scoped memory for tpu_custom_call.1']
    #allocation7 [shape = 'u8[2048]{0}', space=vmem, size = 0x800, scoped, tag = 'output window, operand 0, single buffered']
    %7 = vsyncpa [#allocation3], 0
    %8 = vsyncpa [#allocation6], 0
    %9 = vsyncpa [#allocation4], 0
    // Predicated region
    $region2: #{tpu_custom_call.1} parent=1 // pred_check
      _
    $region3: #{tpu_custom_call.1} parent=1 // pred_check_branch
      %11 = sbr.rel (0) target = $region5
    $region4: #{tpu_custom_call.1} parent=1 // pred_region
      %s12 = sadd.s32 0, 0
      %14 = vsyncadd [#allocation3], 0
      %s15 = smul.addr %s12, 4
      %s16 = scalar_lea.hbm %s0, %s15
      %s18 = sshll.u32 %s16, 4
      %s19 = int_to_ptr.hbm [resolvable:$true] %s18
      %s20 = sshll.u32 [#allocation2], 4
      %s21 = int_to_ptr.vmem [resolvable:$true] %s20
      %23 = dma.hbm_to_vmem [thread:$0]  %s19, 64, %s21, [#allocation3]
    $region5: #{tpu_custom_call.1} parent=1 // pred_fallthru
      _
    // Predicated region
    $region6: #{tpu_custom_call.1} parent=1 // pred_check
      _
    $region7: #{tpu_custom_call.1} parent=1 // pred_check_branch
      %25 = sbr.rel (0) target = $region9
    $region8: #{tpu_custom_call.1} parent=1 // pred_region
      %s26 = sadd.s32 0, 0
      %28 = vsyncadd [#allocation6], 0
      %s29 = smul.addr %s26, 4
      %s30 = scalar_lea.hbm %s1, %s29
      %s32 = sshll.u32 %s30, 4
      %s33 = int_to_ptr.hbm [resolvable:$true] %s32
      %s34 = sshll.u32 [#allocation5], 4
      %s35 = int_to_ptr.vmem [resolvable:$true] %s34
      %37 = dma.hbm_to_vmem [thread:$0]  %s33, 64, %s35, [#allocation6]
    $region9: #{tpu_custom_call.1} parent=1 // pred_fallthru
      _
    // Predicated region
    $region10: #{tpu_custom_call.1} parent=1 // pred_check
      _
    $region11: #{tpu_custom_call.1} parent=1 // pred_check_branch
      %39 = sbr.rel (0) target = $region13
    $region12: #{tpu_custom_call.1} parent=1 // pred_region
      %41 = dma.done [#allocation3], 64
    $region13: #{tpu_custom_call.1} parent=1 // pred_fallthru
      _
    // Predicated region
    $region14: #{tpu_custom_call.1} parent=1 // pred_check
      _
    $region15: #{tpu_custom_call.1} parent=1 // pred_check_branch
      %43 = sbr.rel (0) target = $region17
    $region16: #{tpu_custom_call.1} parent=1 // pred_region
      %45 = dma.done [#allocation6], 64
    $region17: #{tpu_custom_call.1} parent=1 // pred_fallthru
      _
    %s46 = sadd.s32 0, 0
    %s47 = sadd.s32 0, 0
    %p48 = scmp.eq.s32.totalorder 0, 0
    // Predicated region
    $region18: #{tpu_custom_call.1} parent=1 // pred_check
      %p49 = pneg %p48
    $region19: #{tpu_custom_call.1} parent=1 // pred_check_branch
      %51 = sbr.rel (%p49) target = $region21
    $region20: #{tpu_custom_call.1} parent=1 // pred_region
      %52 = vst [vmem:[#allocation7] sm:$0xf] 0.0
    $region21: #{tpu_custom_call.1} parent=1 // pred_fallthru
      _
    %v53 = vld [vmem:[#allocation2] sm:$0xf]
    %v54 = vld [vmem:[#allocation5] sm:$0xf]
    %v55 = vsub.f32 %v53, %v54
    %v56 = vmul.f32 %v55, %v55
    %v57 = vld [vmem:[#allocation7] sm:$0xf]
    %v58 = vadd.f32 %v57, %v56
    %59 = vst [vmem:[#allocation7] sm:$0xf] %v58
    // Predicated region
    $region22: #{tpu_custom_call.1} parent=1 // pred_check
      _
    $region23: #{tpu_custom_call.1} parent=1 // pred_check_branch
      %61 = sbr.rel (0) target = $region25
    $region24: #{tpu_custom_call.1} parent=1 // pred_region
      %63 = vsyncadd [#allocation4], 0
      %s65 = sshll.u32 [#allocation7], 4
      %s66 = int_to_ptr.vmem [resolvable:$true] %s65
      %s67 = sshll.u32 %s2, 4
      %s68 = int_to_ptr.hbm [resolvable:$true] %s67
      %70 = dma.vmem_to_hbm [thread:$0]  %s66, 64, %s68, [#allocation4]
    $region25: #{tpu_custom_call.1} parent=1 // pred_fallthru
      _
    // Predicated region
    $region26: #{tpu_custom_call.1} parent=1 // pred_check
      _
    $region27: #{tpu_custom_call.1} parent=1 // pred_check_branch
      %72 = sbr.rel (0) target = $region29
    $region28: #{tpu_custom_call.1} parent=1 // pred_region
      %74 = dma.done [#allocation4], 64
    $region29: #{tpu_custom_call.1} parent=1 // pred_fallthru
      _
    %75 = vsyncpa [#allocation3], 1
    %76 = vsyncpa [#allocation6], 1
    %77 = vsyncpa [#allocation4], 1

</llo_original>
